<compile_context>
chip_gen: v5e
topology: v5e:2x2
jax: 0.10.0
libtpu: 0.0.40
codegen_flags: <defaults>
</compile_context>

<pallas_src>
import functools

import jax
import jax.numpy as jnp
from jax.experimental import pallas as pl
from jax.experimental.pallas import tpu as pltpu

_EPS = 1e-12  # matches F.normalize(p=2, dim=1) default eps


def _mvm_contrastive_kernel(ori_ref, rev_t_ref, partial_ref, colsum_ref, *,
                            temp, tile_n):
    """One row-tile of the (B*L)x(B*L) contrastive similarity matrix.

    ori_ref     : [tile_n, C]  row tile of the original features (un-normalized)
    rev_t_ref   : [C, N]       recovered features, pre-transposed (contraction
                               dim leading on the RHS -> plain MXU matmul)
    partial_ref : [1, 1, 128]  per-tile  sum_r LSE_row(r) - 2*sum_r sim[r, r]
    colsum_ref  : [1, 1, N]    per-tile  sum_r exp(sim[r, :] - shift)
    """
    i = pl.program_id(0)

    # ---- L2 normalization (== F.normalize(p=2, dim=1, eps=1e-12)) ----------
    ori = ori_ref[...].astype(jnp.float32)                         # [tile_n, C]
    ori_n = ori / jnp.maximum(
        jnp.sqrt(jnp.sum(ori * ori, axis=1, keepdims=True)), _EPS)

    rev_t = rev_t_ref[...].astype(jnp.float32)                     # [C, N]
    rev_n = rev_t / jnp.maximum(
        jnp.sqrt(jnp.sum(rev_t * rev_t, axis=0, keepdims=True)), _EPS)

    # ---- similarity tile on the MXU -----------------------------------------
    sim = jnp.dot(ori_n, rev_n, preferred_element_type=jnp.float32) * temp

    # ONE exp pass feeds both the row- and column-logsumexp. Unit-norm inputs
    # guarantee |sim| <= |temp|, so the static shift is numerically safe.
    shift = abs(float(temp))
    e = jnp.exp(sim - shift)                                       # [tile_n, N]

    # rows: sum_r logsumexp_j sim[r, j]
    row_lse = shift + jnp.log(jnp.sum(e, axis=1, keepdims=True))   # [tile_n, 1]

    # diagonal (cross-entropy target logits): sim[r, i*tile_n + r]
    r_iota = jax.lax.broadcasted_iota(jnp.int32, sim.shape, 0)
    c_iota = jax.lax.broadcasted_iota(jnp.int32, sim.shape, 1)
    diag_sum = jnp.sum(jnp.where(c_iota == r_iota + i * tile_n, sim, 0.0))

    partial = jnp.sum(row_lse) - 2.0 * diag_sum
    partial_ref[...] = jnp.full(partial_ref.shape, partial, jnp.float32)

    # columns: exp-sum partials; the cheap O(N) log + reduce runs in XLA.
    colsum_ref[...] = jnp.sum(e, axis=0).reshape(colsum_ref.shape)


def mask_vision_contrastive_loss(recovered_img_feats, ori_img_feats, temp,
                                 tile_n=128):
    """(CE(sim, arange) + CE(sim.T, arange)) / 2, sim = n_ori @ n_rev.T * temp."""
    B, L, C = ori_img_feats.shape
    N = B * L
    tile_n = min(int(tile_n), N)
    if N % tile_n != 0:
        # TODO(synk): pad + mask rows instead of falling back to one big tile.
        tile_n = N
    grid_n = N // tile_n

    ori_flat = ori_img_feats.reshape(N, C)                    # 'b l c -> (b l) c'
    rev_t = jnp.transpose(recovered_img_feats.reshape(N, C))  # [C, N] pre-transposed

    partial, colsum = pl.pallas_call(
        functools.partial(_mvm_contrastive_kernel, temp=float(temp),
                          tile_n=tile_n),
        grid=(grid_n,),
        in_specs=[
            pl.BlockSpec((tile_n, C), lambda i: (i, 0)),      # row tile of LHS
            pl.BlockSpec((C, N), lambda i: (0, 0)),           # RHS resident in VMEM
        ],
        out_specs=(
            pl.BlockSpec((1, 1, 128), lambda i: (i, 0, 0)),
            pl.BlockSpec((1, 1, N), lambda i: (i, 0, 0)),
        ),
        out_shape=(
            jax.ShapeDtypeStruct((grid_n, 1, 128), jnp.float32),
            jax.ShapeDtypeStruct((grid_n, 1, N), jnp.float32),
        ),
        compiler_params=pltpu.CompilerParams(
            dimension_semantics=("parallel",)),  # independent tiles (v7x: 2 TCs)
    )(ori_flat, rev_t)

    # O(N) epilogue: finish the column logsumexp and combine the scalars.
    shift = abs(float(temp))
    col_lse_sum = jnp.sum(shift + jnp.log(jnp.sum(colsum, axis=(0, 1))))
    row_minus_diag = jnp.sum(partial[:, 0, 0])
    return 0.5 * (row_minus_diag + col_lse_sum) / N


class MaskVisionContrastiveCriterionPallas:
    """Pallas port of MaskVisionContrastiveCriterion.forward."""

    def __init__(self, mvm_temp):
        self.temp = float(mvm_temp)
        self._loss_fn = jax.jit(
            functools.partial(mask_vision_contrastive_loss, temp=self.temp))

    def forward(self, outputs, memory_cache):
        recovered = outputs["mvm_recovered_img"]
        ori = memory_cache["mvm_raw_projected_flattened"]
        return self._loss_fn(recovered, ori)

    __call__ = forward


def _reference_loss(recovered_img_feats, ori_img_feats, temp):
    """Plain-JAX reference mirroring the PyTorch module (for verification)."""
    B, L, C = ori_img_feats.shape
    N = B * L
    fo = ori_img_feats.reshape(N, C)
    fr = recovered_img_feats.reshape(N, C)
    no = fo / jnp.maximum(jnp.linalg.norm(fo, axis=1, keepdims=True), _EPS)
    nr = fr / jnp.maximum(jnp.linalg.norm(fr, axis=1, keepdims=True), _EPS)
    sim = (no @ nr.T) * temp
    idx = jnp.arange(N)
    loss_t = -jnp.mean(jax.nn.log_softmax(sim, axis=1)[idx, idx])
    loss_i = -jnp.mean(jax.nn.log_softmax(sim, axis=0)[idx, idx])
    return 0.5 * (loss_t + loss_i)


if __name__ == "__main__":
    key = jax.random.PRNGKey(0)
    k1, k2 = jax.random.split(key)

    B, L, C = 2, 64, 32          # N = B*L = 128: one lane-dense 128x128 tile
    mvm_temp = 0.07

    recovered = jax.random.normal(k1, (B, L, C), jnp.float32)
    ori = jax.random.normal(k2, (B, L, C), jnp.float32)

    outputs = {"mvm_recovered_img": recovered}
    memory_cache = {"mvm_raw_projected_flattened": ori}

    criterion = MaskVisionContrastiveCriterionPallas(mvm_temp=mvm_temp)
    loss = criterion.forward(outputs, memory_cache)
    loss = jax.block_until_ready(loss)

    ref = jax.block_until_ready(_reference_loss(recovered, ori, mvm_temp))

    assert bool(jnp.isfinite(loss)), f"non-finite loss: {loss}"
    assert bool(jnp.allclose(loss, ref, rtol=1e-3, atol=1e-3)), (loss, ref)
    print("KERNEL_OK")
</pallas_src>

<mosaic_0001>
module attributes {stable_mosaic.version = 11 : i64} {
  func.func @_mvm_contrastive_kernel(%arg0: i32, %arg1: memref<128x32xf32, #tpu.memory_space<vmem>>, %arg2: memref<32x128xf32, #tpu.memory_space<vmem>>, %arg3: memref<1x1x128xf32, #tpu.memory_space<vmem>>, %arg4: memref<1x1x128xf32, #tpu.memory_space<vmem>>) attributes {dimension_semantics = [#tpu.dimension_semantics<parallel>], iteration_bounds = array<i64: 1>, scalar_prefetch = 0 : i64, scratch_operands = 0 : i64, tpu.core_type = #tpu.core_type<tc>, window_params = [{transform_indices = @transform_0, window_bounds = array<i64: 128, 32>}, {pipeline_mode = #tpu.pipeline_mode<synchronous>, transform_indices = @transform_1, window_bounds = array<i64: 32, 128>}, {transform_indices = @transform_2, window_bounds = array<i64: 1, 1, 128>}, {transform_indices = @transform_3, window_bounds = array<i64: 1, 1, 128>}]} {
    %c0 = arith.constant 0 : index
    %c0_0 = arith.constant 0 : index
    %0 = vector.load %arg1[%c0, %c0_0] : memref<128x32xf32, #tpu.memory_space<vmem>>, vector<128x32xf32>
    %1 = arith.mulf %0, %0 : vector<128x32xf32>
    %cst = arith.constant dense<0.000000e+00> : vector<128xf32>
    %2 = vector.multi_reduction <add>, %1, %cst [1] : vector<128x32xf32> to vector<128xf32>
    %3 = vector.shape_cast %2 : vector<128xf32> to vector<128x1xf32>
    %4 = math.sqrt %3 : vector<128x1xf32>
    %cst_1 = arith.constant 9.99999996E-13 : f32
    %5 = vector.broadcast %cst_1 : f32 to vector<128x1xf32>
    %6 = arith.maximumf %4, %5 : vector<128x1xf32>
    %7 = vector.broadcast %6 : vector<128x1xf32> to vector<128x32xf32>
    %8 = arith.divf %0, %7 : vector<128x32xf32>
    %c0_2 = arith.constant 0 : index
    %c0_3 = arith.constant 0 : index
    %9 = vector.load %arg2[%c0_2, %c0_3] : memref<32x128xf32, #tpu.memory_space<vmem>>, vector<32x128xf32>
    %10 = arith.mulf %9, %9 : vector<32x128xf32>
    %cst_4 = arith.constant dense<0.000000e+00> : vector<128xf32>
    %11 = vector.multi_reduction <add>, %10, %cst_4 [0] : vector<32x128xf32> to vector<128xf32>
    %12 = vector.shape_cast %11 : vector<128xf32> to vector<1x128xf32>
    %13 = math.sqrt %12 : vector<1x128xf32>
    %cst_5 = arith.constant 9.99999996E-13 : f32
    %14 = vector.broadcast %cst_5 : f32 to vector<1x128xf32>
    %15 = arith.maximumf %13, %14 : vector<1x128xf32>
    %16 = vector.broadcast %15 : vector<1x128xf32> to vector<32x128xf32>
    %17 = arith.divf %9, %16 : vector<32x128xf32>
    %cst_6 = arith.constant dense<0.000000e+00> : vector<128x128xf32>
    %18 = tpu.matmul %8, %17, %cst_6 {dimension_numbers = #tpu.dot_dimension_numbers<[1], [0], [0], [1], [0, 0, 1, 1], [], []>} : vector<128x32xf32>, vector<32x128xf32>, vector<128x128xf32> -> vector<128x128xf32>
    %cst_7 = arith.constant 7.000000e-02 : f32
    %19 = vector.broadcast %cst_7 : f32 to vector<128x128xf32>
    %20 = arith.mulf %18, %19 : vector<128x128xf32>
    %cst_8 = arith.constant 7.000000e-02 : f32
    %21 = vector.broadcast %cst_8 : f32 to vector<128x128xf32>
    %22 = arith.subf %20, %21 : vector<128x128xf32>
    %23 = math.exp %22 : vector<128x128xf32>
    %cst_9 = arith.constant dense<0.000000e+00> : vector<128xf32>
    %24 = vector.multi_reduction <add>, %23, %cst_9 [1] : vector<128x128xf32> to vector<128xf32>
    %25 = vector.shape_cast %24 : vector<128xf32> to vector<128x1xf32>
    %26 = math.log %25 : vector<128x1xf32>
    %cst_10 = arith.constant 7.000000e-02 : f32
    %27 = vector.broadcast %cst_10 : f32 to vector<128x1xf32>
    %28 = arith.addf %27, %26 : vector<128x1xf32>
    %29 = tpu.iota {dimensions = array<i32: 0>} : vector<128x128xi32>
    %30 = tpu.iota {dimensions = array<i32: 1>} : vector<128x128xi32>
    %c128_i32 = arith.constant 128 : i32
    %31 = arith.muli %arg0, %c128_i32 : i32
    %32 = vector.broadcast %31 : i32 to vector<128x128xi32>
    %33 = arith.addi %29, %32 : vector<128x128xi32>
    %34 = arith.cmpi eq, %30, %33 : vector<128x128xi32>
    %cst_11 = arith.constant 0.000000e+00 : f32
    %35 = vector.broadcast %cst_11 : f32 to vector<128x128xf32>
    %36 = arith.select %34, %20, %35 : vector<128x128xi1>, vector<128x128xf32>
    %37 = vector.shape_cast %36 : vector<128x128xf32> to vector<1x128x128xf32>
    %cst_12 = arith.constant dense<0.000000e+00> : vector<1xf32>
    %38 = vector.multi_reduction <add>, %37, %cst_12 [1, 2] : vector<1x128x128xf32> to vector<1xf32>
    %39 = vector.shape_cast %38 : vector<1xf32> to vector<1x1x1xf32>
    %40 = vector.extract %39[0, 0, 0] : f32 from vector<1x1x1xf32>
    %41 = vector.shape_cast %28 : vector<128x1xf32> to vector<1x128x1xf32>
    %cst_13 = arith.constant dense<0.000000e+00> : vector<1xf32>
    %42 = vector.multi_reduction <add>, %41, %cst_13 [1, 2] : vector<1x128x1xf32> to vector<1xf32>
    %43 = vector.shape_cast %42 : vector<1xf32> to vector<1x1x1xf32>
    %44 = vector.extract %43[0, 0, 0] : f32 from vector<1x1x1xf32>
    %cst_14 = arith.constant 2.000000e+00 : f32
    %45 = arith.mulf %cst_14, %40 : f32
    %46 = arith.subf %44, %45 : f32
    %47 = vector.broadcast %46 : f32 to vector<1x1x128xf32>
    %c0_15 = arith.constant 0 : index
    %c0_16 = arith.constant 0 : index
    %c0_17 = arith.constant 0 : index
    %48 = vector.load %arg3[%c0_15, %c0_16, %c0_17] : memref<1x1x128xf32, #tpu.memory_space<vmem>>, vector<1x1x128xf32>
    tpu.vector_store %arg3[%c0_15, %c0_16, %c0_17], %47 {strides = array<i32>} : memref<1x1x128xf32, #tpu.memory_space<vmem>>, vector<1x1x128xf32>,
    %cst_18 = arith.constant dense<0.000000e+00> : vector<128xf32>
    %49 = vector.multi_reduction <add>, %23, %cst_18 [0] : vector<128x128xf32> to vector<128xf32>
    %50 = vector.shape_cast %49 : vector<128xf32> to vector<1x1x128xf32>
    %c0_19 = arith.constant 0 : index
    %c0_20 = arith.constant 0 : index
    %c0_21 = arith.constant 0 : index
    %51 = vector.load %arg4[%c0_19, %c0_20, %c0_21] : memref<1x1x128xf32, #tpu.memory_space<vmem>>, vector<1x1x128xf32>
    tpu.vector_store %arg4[%c0_19, %c0_20, %c0_21], %50 {strides = array<i32>} : memref<1x1x128xf32, #tpu.memory_space<vmem>>, vector<1x1x128xf32>,
    return
  }
  func.func @transform_0(%arg0: i32) -> (i32, i32) {
    %c0_i32 = arith.constant 0 : i32
    %c0_i32_0 = arith.constant 0 : i32
    return %arg0, %c0_i32 : i32, i32
  }
  func.func @transform_1(%arg0: i32) -> (i32, i32) {
    %c0_i32 = arith.constant 0 : i32
    %c0_i32_0 = arith.constant 0 : i32
    %c0_i32_1 = arith.constant 0 : i32
    return %c0_i32, %c0_i32_0 : i32, i32
  }
  func.func @transform_2(%arg0: i32) -> (i32, i32, i32) {
    %c0_i32 = arith.constant 0 : i32
    %c0_i32_0 = arith.constant 0 : i32
    %c0_i32_1 = arith.constant 0 : i32
    return %arg0, %c0_i32, %c0_i32_0 : i32, i32, i32
  }
  func.func @transform_3(%arg0: i32) -> (i32, i32, i32) {
    %c0_i32 = arith.constant 0 : i32
    %c0_i32_0 = arith.constant 0 : i32
    %c0_i32_1 = arith.constant 0 : i32
    return %arg0, %c0_i32, %c0_i32_0 : i32, i32, i32
  }
}

</mosaic_0001>

<llo_original>
// kernel: mask_vision_contrastive_loss.1
$region0: #{mask_vision_contrastive_loss.1}
  #allocation0 [shape = 'u32[]', space=smem, size = 0x4, offset = 0x4, fixed_abs, tag = 'smem constant byte address 0x4 - core index']
  #allocation1 [shape = 'u32[72,128]{1,0:T(1,128)}', space=vmem, size = 0x9000, scoped, tag = 'internal scratch']
  %s0 = inlined_call_operand.vmem [shape: f32[128,32], index: 0, kind: input, shape index: {}]
  %s1 = inlined_call_operand.vmem [shape: f32[32,128], index: 1, kind: input, shape index: {}]
  %s2 = inlined_call_operand.vmem [shape: f32[1,1,128], index: 2, kind: output, shape index: {0}]
  %s3 = inlined_call_operand.vmem [shape: f32[1,1,128], index: 3, kind: output, shape index: {1}]
  %4 = xla_tuple %s2, %s3
  %s5 = sld [smem:[#allocation0]]
  $region26: #{mask_vision_contrastive_loss.1} parent=0
    _
  %s7 = ssub.s32 1, %s5
  %s8 = scalar_select 0, %s7, %s5
  // Predicated region
  $region2: #{mask_vision_contrastive_loss.1} parent=0 // pred_check
    _
  $region3: #{mask_vision_contrastive_loss.1} parent=0 // pred_check_branch
    %10 = sbr.rel (0) target = $region5
  $region4: #{mask_vision_contrastive_loss.1} parent=0 // pred_region
    _
  $region5: #{mask_vision_contrastive_loss.1} parent=0 // pred_fallthru
    _
  // Predicated region
  $region6: #{mask_vision_contrastive_loss.1} parent=0 // pred_check
    _
  $region7: #{mask_vision_contrastive_loss.1} parent=0 // pred_check_branch
    %12 = sbr.rel (0) target = $region9
  $region8: #{mask_vision_contrastive_loss.1} parent=0 // pred_region
    _
  $region9: #{mask_vision_contrastive_loss.1} parent=0 // pred_fallthru
    _
  %v13 = vld [vmem:[%s0] sm:$0xff]
  %v14 = vld [vmem:[%s0 + $0x8] sm:$0xff]
  %v15 = vld [vmem:[%s0 + $0x10] sm:$0xff]
  %v16 = vld [vmem:[%s0 + $0x18] sm:$0xff]
  %v17 = vld [vmem:[%s0 + $0x20] sm:$0xff]
  %v18 = vld [vmem:[%s0 + $0x28] sm:$0xff]
  %v19 = vld [vmem:[%s0 + $0x30] sm:$0xff]
  %v20 = vld [vmem:[%s0 + $0x38] sm:$0xff]
  %v21 = vld [vmem:[%s0 + $0x40] sm:$0xff]
  %v22 = vld [vmem:[%s0 + $0x48] sm:$0xff]
  %v23 = vld [vmem:[%s0 + $0x50] sm:$0xff]
  %v24 = vld [vmem:[%s0 + $0x58] sm:$0xff]
  %v25 = vld [vmem:[%s0 + $0x60] sm:$0xff]
  %v26 = vld [vmem:[%s0 + $0x68] sm:$0xff]
  %v27 = vld [vmem:[%s0 + $0x70] sm:$0xff]
  %v28 = vld [vmem:[%s0 + $0x78] sm:$0xff]
  %v29 = vmul.f32 %v13, %v13
  %v30 = vmul.f32 %v14, %v14
  %v31 = vmul.f32 %v15, %v15
  %v32 = vmul.f32 %v16, %v16
  %v33 = vmul.f32 %v17, %v17
  %v34 = vmul.f32 %v18, %v18
  %v35 = vmul.f32 %v19, %v19
  %v36 = vmul.f32 %v20, %v20
  %v37 = vmul.f32 %v21, %v21
  %v38 = vmul.f32 %v22, %v22
  %v39 = vmul.f32 %v23, %v23
  %v40 = vmul.f32 %v24, %v24
  %v41 = vmul.f32 %v25, %v25
  %v42 = vmul.f32 %v26, %v26
  %v43 = vmul.f32 %v27, %v27
  %v44 = vmul.f32 %v28, %v28
  %vm45 = vcmask 261120
  %v46 = vsel %vm45, %v29, 0.0
  %47 = vadd.xlane.f32.xlu0 %v46
  %v48 = vpop.xlane.xlu0 %47
  %v49 = vsel %vm45, %v30, 0.0
  %50 = vadd.xlane.f32.xlu0 %v49
  %v51 = vpop.xlane.xlu0 %50
  %v52 = vsel %vm45, %v31, 0.0
  %53 = vadd.xlane.f32.xlu0 %v52
  %v54 = vpop.xlane.xlu0 %53
  %v55 = vsel %vm45, %v32, 0.0
  %56 = vadd.xlane.f32.xlu0 %v55
  %v57 = vpop.xlane.xlu0 %56
  %v58 = vsel %vm45, %v33, 0.0
  %59 = vadd.xlane.f32.xlu0 %v58
  %v60 = vpop.xlane.xlu0 %59
  %v61 = vsel %vm45, %v34, 0.0
  %62 = vadd.xlane.f32.xlu0 %v61
  %v63 = vpop.xlane.xlu0 %62
  %v64 = vsel %vm45, %v35, 0.0
  %65 = vadd.xlane.f32.xlu0 %v64
  %v66 = vpop.xlane.xlu0 %65
  %v67 = vsel %vm45, %v36, 0.0
  %68 = vadd.xlane.f32.xlu0 %v67
  %v69 = vpop.xlane.xlu0 %68
  %v70 = vsel %vm45, %v37, 0.0
  %71 = vadd.xlane.f32.xlu0 %v70
  %v72 = vpop.xlane.xlu0 %71
  %v73 = vsel %vm45, %v38, 0.0
  %74 = vadd.xlane.f32.xlu0 %v73
  %v75 = vpop.xlane.xlu0 %74
  %v76 = vsel %vm45, %v39, 0.0
  %77 = vadd.xlane.f32.xlu0 %v76
  %v78 = vpop.xlane.xlu0 %77
  %v79 = vsel %vm45, %v40, 0.0
  %80 = vadd.xlane.f32.xlu0 %v79
  %v81 = vpop.xlane.xlu0 %80
  %v82 = vsel %vm45, %v41, 0.0
  %83 = vadd.xlane.f32.xlu0 %v82
  %v84 = vpop.xlane.xlu0 %83
  %v85 = vsel %vm45, %v42, 0.0
  %86 = vadd.xlane.f32.xlu0 %v85
  %v87 = vpop.xlane.xlu0 %86
  %v88 = vsel %vm45, %v43, 0.0
  %89 = vadd.xlane.f32.xlu0 %v88
  %v90 = vpop.xlane.xlu0 %89
  %v91 = vsel %vm45, %v44, 0.0
  %92 = vadd.xlane.f32.xlu0 %v91
  %v93 = vpop.xlane.xlu0 %92
  %v94 = vrsqrt.pop %v48
  %v95 = vmul.f32 %v94, %v48
  %v96 = vmul.f32 %v95, %v94
  %v97 = vmul.f32 0.5, %v96
  %v98 = vsub.f32 1.5, %v97
  %v99 = vmul.f32 %v94, %v98
  %v100 = vmul.f32 %v48, %v99
  %vm101 = vcmp.eq.f32.partialorder %v48, inf
  %v102 = vsel %vm101, %v48, %v100
  %vm103 = vcmp.eq.f32.partialorder %v48, 0.0
  %v104 = vand.u32 %v48, 2147483648
  %v105 = vsel %vm103, %v104, %v102
  %v106 = vrsqrt.pop %v51
  %v107 = vmul.f32 %v106, %v51
  %v108 = vmul.f32 %v107, %v106
  %v109 = vmul.f32 0.5, %v108
  %v110 = vsub.f32 1.5, %v109
  %v111 = vmul.f32 %v106, %v110
  %v112 = vmul.f32 %v51, %v111
  %vm113 = vcmp.eq.f32.partialorder %v51, inf
  %v114 = vsel %vm113, %v51, %v112
  %vm115 = vcmp.eq.f32.partialorder %v51, 0.0
  %v116 = vand.u32 %v51, 2147483648
  %v117 = vsel %vm115, %v116, %v114
  %v118 = vrsqrt.pop %v54
  %v119 = vmul.f32 %v118, %v54
  %v120 = vmul.f32 %v119, %v118
  %v121 = vmul.f32 0.5, %v120
  %v122 = vsub.f32 1.5, %v121
  %v123 = vmul.f32 %v118, %v122
  %v124 = vmul.f32 %v54, %v123
  %vm125 = vcmp.eq.f32.partialorder %v54, inf
  %v126 = vsel %vm125, %v54, %v124
  %vm127 = vcmp.eq.f32.partialorder %v54, 0.0
  %v128 = vand.u32 %v54, 2147483648
  %v129 = vsel %vm127, %v128, %v126
  %v130 = vrsqrt.pop %v57
  %v131 = vmul.f32 %v130, %v57
  %v132 = vmul.f32 %v131, %v130
  %v133 = vmul.f32 0.5, %v132
  %v134 = vsub.f32 1.5, %v133
  %v135 = vmul.f32 %v130, %v134
  %v136 = vmul.f32 %v57, %v135
  %vm137 = vcmp.eq.f32.partialorder %v57, inf
  %v138 = vsel %vm137, %v57, %v136
  %vm139 = vcmp.eq.f32.partialorder %v57, 0.0
  %v140 = vand.u32 %v57, 2147483648
  %v141 = vsel %vm139, %v140, %v138
  %v142 = vrsqrt.pop %v60
  %v143 = vmul.f32 %v142, %v60
  %v144 = vmul.f32 %v143, %v142
  %v145 = vmul.f32 0.5, %v144
  %v146 = vsub.f32 1.5, %v145
  %v147 = vmul.f32 %v142, %v146
  %v148 = vmul.f32 %v60, %v147
  %vm149 = vcmp.eq.f32.partialorder %v60, inf
  %v150 = vsel %vm149, %v60, %v148
  %vm151 = vcmp.eq.f32.partialorder %v60, 0.0
  %v152 = vand.u32 %v60, 2147483648
  %v153 = vsel %vm151, %v152, %v150
  %v154 = vrsqrt.pop %v63
  %v155 = vmul.f32 %v154, %v63
  %v156 = vmul.f32 %v155, %v154
  %v157 = vmul.f32 0.5, %v156
  %v158 = vsub.f32 1.5, %v157
  %v159 = vmul.f32 %v154, %v158
  %v160 = vmul.f32 %v63, %v159
  %vm161 = vcmp.eq.f32.partialorder %v63, inf
  %v162 = vsel %vm161, %v63, %v160
  %vm163 = vcmp.eq.f32.partialorder %v63, 0.0
  %v164 = vand.u32 %v63, 2147483648
  %v165 = vsel %vm163, %v164, %v162
  %v166 = vrsqrt.pop %v66
  %v167 = vmul.f32 %v166, %v66
  %v168 = vmul.f32 %v167, %v166
  %v169 = vmul.f32 0.5, %v168
  %v170 = vsub.f32 1.5, %v169
  %v171 = vmul.f32 %v166, %v170
  %v172 = vmul.f32 %v66, %v171
  %vm173 = vcmp.eq.f32.partialorder %v66, inf
  %v174 = vsel %vm173, %v66, %v172
  %vm175 = vcmp.eq.f32.partialorder %v66, 0.0
  %v176 = vand.u32 %v66, 2147483648
  %v177 = vsel %vm175, %v176, %v174
  %v178 = vrsqrt.pop %v69
  %v179 = vmul.f32 %v178, %v69
  %v180 = vmul.f32 %v179, %v178
  %v181 = vmul.f32 0.5, %v180
  %v182 = vsub.f32 1.5, %v181
  %v183 = vmul.f32 %v178, %v182
  %v184 = vmul.f32 %v69, %v183
  %vm185 = vcmp.eq.f32.partialorder %v69, inf
  %v186 = vsel %vm185, %v69, %v184
  %vm187 = vcmp.eq.f32.partialorder %v69, 0.0
  %v188 = vand.u32 %v69, 2147483648
  %v189 = vsel %vm187, %v188, %v186
  %v190 = vrsqrt.pop %v72
  %v191 = vmul.f32 %v190, %v72
  %v192 = vmul.f32 %v191, %v190
  %v193 = vmul.f32 0.5, %v192
  %v194 = vsub.f32 1.5, %v193
  %v195 = vmul.f32 %v190, %v194
  %v196 = vmul.f32 %v72, %v195
  %vm197 = vcmp.eq.f32.partialorder %v72, inf
  %v198 = vsel %vm197, %v72, %v196
  %vm199 = vcmp.eq.f32.partialorder %v72, 0.0
  %v200 = vand.u32 %v72, 2147483648
  %v201 = vsel %vm199, %v200, %v198
  %v202 = vrsqrt.pop %v75
  %v203 = vmul.f32 %v202, %v75
  %v204 = vmul.f32 %v203, %v202
  %v205 = vmul.f32 0.5, %v204
  %v206 = vsub.f32 1.5, %v205
  %v207 = vmul.f32 %v202, %v206
  %v208 = vmul.f32 %v75, %v207
  %vm209 = vcmp.eq.f32.partialorder %v75, inf
  %v210 = vsel %vm209, %v75, %v208
  %vm211 = vcmp.eq.f32.partialorder %v75, 0.0
  %v212 = vand.u32 %v75, 2147483648
  %v213 = vsel %vm211, %v212, %v210
  %v214 = vrsqrt.pop %v78
  %v215 = vmul.f32 %v214, %v78
  %v216 = vmul.f32 %v215, %v214
  %v217 = vmul.f32 0.5, %v216
  %v218 = vsub.f32 1.5, %v217
  %v219 = vmul.f32 %v214, %v218
  %v220 = vmul.f32 %v78, %v219
  %vm221 = vcmp.eq.f32.partialorder %v78, inf
  %v222 = vsel %vm221, %v78, %v220
  %vm223 = vcmp.eq.f32.partialorder %v78, 0.0
  %v224 = vand.u32 %v78, 2147483648
  %v225 = vsel %vm223, %v224, %v222
  %v226 = vrsqrt.pop %v81
  %v227 = vmul.f32 %v226, %v81
  %v228 = vmul.f32 %v227, %v226
  %v229 = vmul.f32 0.5, %v228
  %v230 = vsub.f32 1.5, %v229
  %v231 = vmul.f32 %v226, %v230
  %v232 = vmul.f32 %v81, %v231
  %vm233 = vcmp.eq.f32.partialorder %v81, inf
  %v234 = vsel %vm233, %v81, %v232
  %vm235 = vcmp.eq.f32.partialorder %v81, 0.0
  %v236 = vand.u32 %v81, 2147483648
  %v237 = vsel %vm235, %v236, %v234
  %v238 = vrsqrt.pop %v84
  %v239 = vmul.f32 %v238, %v84
  %v240 = vmul.f32 %v239, %v238
  %v241 = vmul.f32 0.5, %v240
  %v242 = vsub.f32 1.5, %v241
  %v243 = vmul.f32 %v238, %v242
  %v244 = vmul.f32 %v84, %v243
  %vm245 = vcmp.eq.f32.partialorder %v84, inf
  %v246 = vsel %vm245, %v84, %v244
  %vm247 = vcmp.eq.f32.partialorder %v84, 0.0
  %v248 = vand.u32 %v84, 2147483648
  %v249 = vsel %vm247, %v248, %v246
  %v250 = vrsqrt.pop %v87
  %v251 = vmul.f32 %v250, %v87
  %v252 = vmul.f32 %v251, %v250
  %v253 = vmul.f32 0.5, %v252
  %v254 = vsub.f32 1.5, %v253
  %v255 = vmul.f32 %v250, %v254
  %v256 = vmul.f32 %v87, %v255
  %vm257 = vcmp.eq.f32.partialorder %v87, inf
  %v258 = vsel %vm257, %v87, %v256
  %vm259 = vcmp.eq.f32.partialorder %v87, 0.0
  %v260 = vand.u32 %v87, 2147483648
  %v261 = vsel %vm259, %v260, %v258
  %v262 = vrsqrt.pop %v90
  %v263 = vmul.f32 %v262, %v90
  %v264 = vmul.f32 %v263, %v262
  %v265 = vmul.f32 0.5, %v264
  %v266 = vsub.f32 1.5, %v265
  %v267 = vmul.f32 %v262, %v266
  %v268 = vmul.f32 %v90, %v267
  %vm269 = vcmp.eq.f32.partialorder %v90, inf
  %v270 = vsel %vm269, %v90, %v268
  %vm271 = vcmp.eq.f32.partialorder %v90, 0.0
  %v272 = vand.u32 %v90, 2147483648
  %v273 = vsel %vm271, %v272, %v270
  %v274 = vrsqrt.pop %v93
  %v275 = vmul.f32 %v274, %v93
  %v276 = vmul.f32 %v275, %v274
  %v277 = vmul.f32 0.5, %v276
  %v278 = vsub.f32 1.5, %v277
  %v279 = vmul.f32 %v274, %v278
  %v280 = vmul.f32 %v93, %v279
  %vm281 = vcmp.eq.f32.partialorder %v93, inf
  %v282 = vsel %vm281, %v93, %v280
  %vm283 = vcmp.eq.f32.partialorder %v93, 0.0
  %v284 = vand.u32 %v93, 2147483648
  %v285 = vsel %vm283, %v284, %v282
  %v286 = vmax.f32 %v105, 1e-12
  %v287 = vmax.f32 %v117, 1e-12
  %v288 = vmax.f32 %v129, 1e-12
  %v289 = vmax.f32 %v141, 1e-12
  %v290 = vmax.f32 %v153, 1e-12
  %v291 = vmax.f32 %v165, 1e-12
  %v292 = vmax.f32 %v177, 1e-12
  %v293 = vmax.f32 %v189, 1e-12
  %v294 = vmax.f32 %v201, 1e-12
  %v295 = vmax.f32 %v213, 1e-12
  %v296 = vmax.f32 %v225, 1e-12
  %v297 = vmax.f32 %v237, 1e-12
  %v298 = vmax.f32 %v249, 1e-12
  %v299 = vmax.f32 %v261, 1e-12
  %v300 = vmax.f32 %v273, 1e-12
  %v301 = vmax.f32 %v285, 1e-12
  %v302 = vrcp.pop %v286
  %v303 = vmul.f32 %v286, %v302
  %v304 = vsub.f32 1.0, %v303
  %v305 = vmul.f32 %v302, %v304
  %v306 = vadd.f32 %v302, %v305
  %vm307 = vweird.f32 %v286
  %vm308 = vweird.f32 %v302
  %vm309 = vmor %vm307, %vm308
  %v310 = vsel %vm309, %v302, %v306
  %v311 = vand.u32 2147483647, %v286
  %vm312 = vcmp.eq.f32.partialorder %v311, 8.507059e+37
  %v313 = vand.u32 %v286, 2147483648
  %v314 = vor.u32 1.1754944e-38, %v313
  %v315 = vsel %vm312, %v314, %v310
  %v316 = vmul.f32 %v13, %v315
  %v317 = vrcp.pop %v287
  %v318 = vmul.f32 %v287, %v317
  %v319 = vsub.f32 1.0, %v318
  %v320 = vmul.f32 %v317, %v319
  %v321 = vadd.f32 %v317, %v320
  %vm322 = vweird.f32 %v287
  %vm323 = vweird.f32 %v317
  %vm324 = vmor %vm322, %vm323
  %v325 = vsel %vm324, %v317, %v321
  %v326 = vand.u32 2147483647, %v287
  %vm327 = vcmp.eq.f32.partialorder %v326, 8.507059e+37
  %v328 = vand.u32 %v287, 2147483648
  %v329 = vor.u32 1.1754944e-38, %v328
  %v330 = vsel %vm327, %v329, %v325
  %v331 = vmul.f32 %v14, %v330
  %v332 = vrcp.pop %v288
  %v333 = vmul.f32 %v288, %v332
  %v334 = vsub.f32 1.0, %v333
  %v335 = vmul.f32 %v332, %v334
  %v336 = vadd.f32 %v332, %v335
  %vm337 = vweird.f32 %v288
  %vm338 = vweird.f32 %v332
  %vm339 = vmor %vm337, %vm338
  %v340 = vsel %vm339, %v332, %v336
  %v341 = vand.u32 2147483647, %v288
  %vm342 = vcmp.eq.f32.partialorder %v341, 8.507059e+37
  %v343 = vand.u32 %v288, 2147483648
  %v344 = vor.u32 1.1754944e-38, %v343
  %v345 = vsel %vm342, %v344, %v340
  %v346 = vmul.f32 %v15, %v345
  %v347 = vrcp.pop %v289
  %v348 = vmul.f32 %v289, %v347
  %v349 = vsub.f32 1.0, %v348
  %v350 = vmul.f32 %v347, %v349
  %v351 = vadd.f32 %v347, %v350
  %vm352 = vweird.f32 %v289
  %vm353 = vweird.f32 %v347
  %vm354 = vmor %vm352, %vm353
  %v355 = vsel %vm354, %v347, %v351
  %v356 = vand.u32 2147483647, %v289
  %vm357 = vcmp.eq.f32.partialorder %v356, 8.507059e+37
  %v358 = vand.u32 %v289, 2147483648
  %v359 = vor.u32 1.1754944e-38, %v358
  %v360 = vsel %vm357, %v359, %v355
  %v361 = vmul.f32 %v16, %v360
  %v362 = vrcp.pop %v290
  %v363 = vmul.f32 %v290, %v362
  %v364 = vsub.f32 1.0, %v363
  %v365 = vmul.f32 %v362, %v364
  %v366 = vadd.f32 %v362, %v365
  %vm367 = vweird.f32 %v290
  %vm368 = vweird.f32 %v362
  %vm369 = vmor %vm367, %vm368
  %v370 = vsel %vm369, %v362, %v366
  %v371 = vand.u32 2147483647, %v290
  %vm372 = vcmp.eq.f32.partialorder %v371, 8.507059e+37
  %v373 = vand.u32 %v290, 2147483648
  %v374 = vor.u32 1.1754944e-38, %v373
  %v375 = vsel %vm372, %v374, %v370
  %v376 = vmul.f32 %v17, %v375
  %v377 = vrcp.pop %v291
  %v378 = vmul.f32 %v291, %v377
  %v379 = vsub.f32 1.0, %v378
  %v380 = vmul.f32 %v377, %v379
  %v381 = vadd.f32 %v377, %v380
  %vm382 = vweird.f32 %v291
  %vm383 = vweird.f32 %v377
  %vm384 = vmor %vm382, %vm383
  %v385 = vsel %vm384, %v377, %v381
  %v386 = vand.u32 2147483647, %v291
  %vm387 = vcmp.eq.f32.partialorder %v386, 8.507059e+37
  %v388 = vand.u32 %v291, 2147483648
  %v389 = vor.u32 1.1754944e-38, %v388
  %v390 = vsel %vm387, %v389, %v385
  %v391 = vmul.f32 %v18, %v390
  %v392 = vrcp.pop %v292
  %v393 = vmul.f32 %v292, %v392
  %v394 = vsub.f32 1.0, %v393
  %v395 = vmul.f32 %v392, %v394
  %v396 = vadd.f32 %v392, %v395
  %vm397 = vweird.f32 %v292
  %vm398 = vweird.f32 %v392
  %vm399 = vmor %vm397, %vm398
  %v400 = vsel %vm399, %v392, %v396
  %v401 = vand.u32 2147483647, %v292
  %vm402 = vcmp.eq.f32.partialorder %v401, 8.507059e+37
  %v403 = vand.u32 %v292, 2147483648
  %v404 = vor.u32 1.1754944e-38, %v403
  %v405 = vsel %vm402, %v404, %v400
  %v406 = vmul.f32 %v19, %v405
  %v407 = vrcp.pop %v293
  %v408 = vmul.f32 %v293, %v407
  %v409 = vsub.f32 1.0, %v408
  %v410 = vmul.f32 %v407, %v409
  %v411 = vadd.f32 %v407, %v410
  %vm412 = vweird.f32 %v293
  %vm413 = vweird.f32 %v407
  %vm414 = vmor %vm412, %vm413
  %v415 = vsel %vm414, %v407, %v411
  %v416 = vand.u32 2147483647, %v293
  %vm417 = vcmp.eq.f32.partialorder %v416, 8.507059e+37
  %v418 = vand.u32 %v293, 2147483648
  %v419 = vor.u32 1.1754944e-38, %v418
  %v420 = vsel %vm417, %v419, %v415
  %v421 = vmul.f32 %v20, %v420
  %v422 = vrcp.pop %v294
  %v423 = vmul.f32 %v294, %v422
  %v424 = vsub.f32 1.0, %v423
  %v425 = vmul.f32 %v422, %v424
  %v426 = vadd.f32 %v422, %v425
  %vm427 = vweird.f32 %v294
  %vm428 = vweird.f32 %v422
  %vm429 = vmor %vm427, %vm428
  %v430 = vsel %vm429, %v422, %v426
  %v431 = vand.u32 2147483647, %v294
  %vm432 = vcmp.eq.f32.partialorder %v431, 8.507059e+37
  %v433 = vand.u32 %v294, 2147483648
  %v434 = vor.u32 1.1754944e-38, %v433
  %v435 = vsel %vm432, %v434, %v430
  %v436 = vmul.f32 %v21, %v435
  %v437 = vrcp.pop %v295
  %v438 = vmul.f32 %v295, %v437
  %v439 = vsub.f32 1.0, %v438
  %v440 = vmul.f32 %v437, %v439
  %v441 = vadd.f32 %v437, %v440
  %vm442 = vweird.f32 %v295
  %vm443 = vweird.f32 %v437
  %vm444 = vmor %vm442, %vm443
  %v445 = vsel %vm444, %v437, %v441
  %v446 = vand.u32 2147483647, %v295
  %vm447 = vcmp.eq.f32.partialorder %v446, 8.507059e+37
  %v448 = vand.u32 %v295, 2147483648
  %v449 = vor.u32 1.1754944e-38, %v448
  %v450 = vsel %vm447, %v449, %v445
  %v451 = vmul.f32 %v22, %v450
  %v452 = vrcp.pop %v296
  %v453 = vmul.f32 %v296, %v452
  %v454 = vsub.f32 1.0, %v453
  %v455 = vmul.f32 %v452, %v454
  %v456 = vadd.f32 %v452, %v455
  %vm457 = vweird.f32 %v296
  %vm458 = vweird.f32 %v452
  %vm459 = vmor %vm457, %vm458
  %v460 = vsel %vm459, %v452, %v456
  %v461 = vand.u32 2147483647, %v296
  %vm462 = vcmp.eq.f32.partialorder %v461, 8.507059e+37
  %v463 = vand.u32 %v296, 2147483648
  %v464 = vor.u32 1.1754944e-38, %v463
  %v465 = vsel %vm462, %v464, %v460
  %v466 = vmul.f32 %v23, %v465
  %v467 = vrcp.pop %v297
  %v468 = vmul.f32 %v297, %v467
  %v469 = vsub.f32 1.0, %v468
  %v470 = vmul.f32 %v467, %v469
  %v471 = vadd.f32 %v467, %v470
  %vm472 = vweird.f32 %v297
  %vm473 = vweird.f32 %v467
  %vm474 = vmor %vm472, %vm473
  %v475 = vsel %vm474, %v467, %v471
  %v476 = vand.u32 2147483647, %v297
  %vm477 = vcmp.eq.f32.partialorder %v476, 8.507059e+37
  %v478 = vand.u32 %v297, 2147483648
  %v479 = vor.u32 1.1754944e-38, %v478
  %v480 = vsel %vm477, %v479, %v475
  %v481 = vmul.f32 %v24, %v480
  %v482 = vrcp.pop %v298
  %v483 = vmul.f32 %v298, %v482
  %v484 = vsub.f32 1.0, %v483
  %v485 = vmul.f32 %v482, %v484
  %v486 = vadd.f32 %v482, %v485
  %vm487 = vweird.f32 %v298
  %vm488 = vweird.f32 %v482
  %vm489 = vmor %vm487, %vm488
  %v490 = vsel %vm489, %v482, %v486
  %v491 = vand.u32 2147483647, %v298
  %vm492 = vcmp.eq.f32.partialorder %v491, 8.507059e+37
  %v493 = vand.u32 %v298, 2147483648
  %v494 = vor.u32 1.1754944e-38, %v493
  %v495 = vsel %vm492, %v494, %v490
  %v496 = vmul.f32 %v25, %v495
  %v497 = vrcp.pop %v299
  %v498 = vmul.f32 %v299, %v497
  %v499 = vsub.f32 1.0, %v498
  %v500 = vmul.f32 %v497, %v499
  %v501 = vadd.f32 %v497, %v500
  %vm502 = vweird.f32 %v299
  %vm503 = vweird.f32 %v497
  %vm504 = vmor %vm502, %vm503
  %v505 = vsel %vm504, %v497, %v501
  %v506 = vand.u32 2147483647, %v299
  %vm507 = vcmp.eq.f32.partialorder %v506, 8.507059e+37
  %v508 = vand.u32 %v299, 2147483648
  %v509 = vor.u32 1.1754944e-38, %v508
  %v510 = vsel %vm507, %v509, %v505
  %v511 = vmul.f32 %v26, %v510
  %v512 = vrcp.pop %v300
  %v513 = vmul.f32 %v300, %v512
  %v514 = vsub.f32 1.0, %v513
  %v515 = vmul.f32 %v512, %v514
  %v516 = vadd.f32 %v512, %v515
  %vm517 = vweird.f32 %v300
  %vm518 = vweird.f32 %v512
  %vm519 = vmor %vm517, %vm518
  %v520 = vsel %vm519, %v512, %v516
  %v521 = vand.u32 2147483647, %v300
  %vm522 = vcmp.eq.f32.partialorder %v521, 8.507059e+37
  %v523 = vand.u32 %v300, 2147483648
  %v524 = vor.u32 1.1754944e-38, %v523
  %v525 = vsel %vm522, %v524, %v520
  %v526 = vmul.f32 %v27, %v525
  %v527 = vrcp.pop %v301
  %v528 = vmul.f32 %v301, %v527
  %v529 = vsub.f32 1.0, %v528
  %v530 = vmul.f32 %v527, %v529
  %v531 = vadd.f32 %v527, %v530
  %vm532 = vweird.f32 %v301
  %vm533 = vweird.f32 %v527
  %vm534 = vmor %vm532, %vm533
  %v535 = vsel %vm534, %v527, %v531
  %v536 = vand.u32 2147483647, %v301
  %vm537 = vcmp.eq.f32.partialorder %v536, 8.507059e+37
  %v538 = vand.u32 %v301, 2147483648
  %v539 = vor.u32 1.1754944e-38, %v538
  %v540 = vsel %vm537, %v539, %v535
  %v541 = vmul.f32 %v28, %v540
  %v542 = vld [vmem:[%s1] sm:$0xff]
  %v543 = vld [vmem:[%s1 + $0x8] sm:$0xff]
  %v544 = vld [vmem:[%s1 + $0x10] sm:$0xff]
  %v545 = vld [vmem:[%s1 + $0x18] sm:$0xff]
  %v546 = vmul.f32 %v542, %v542
  %v547 = vmul.f32 %v543, %v543
  %v548 = vmul.f32 %v544, %v544
  %v549 = vmul.f32 %v545, %v545
  %v550 = vadd.f32 %v546, %v547
  %v551 = vadd.f32 %v550, %v548
  %v552 = vadd.f32 %v551, %v549
  %v553 = vrot.slane %v552, 4
  %v554 = vadd.f32 %v552, %v553
  %v555 = vrot.slane %v554, 2
  %v556 = vadd.f32 %v554, %v555
  %v557 = vrot.slane %v556, 1
  %v558 = vadd.f32 %v556, %v557
  %v559 = vrsqrt.pop %v558
  %v560 = vmul.f32 %v559, %v558
  %v561 = vmul.f32 %v560, %v559
  %v562 = vmul.f32 0.5, %v561
  %v563 = vsub.f32 1.5, %v562
  %v564 = vmul.f32 %v559, %v563
  %v565 = vmul.f32 %v558, %v564
  %vm566 = vcmp.eq.f32.partialorder %v558, inf
  %v567 = vsel %vm566, %v558, %v565
  %vm568 = vcmp.eq.f32.partialorder %v558, 0.0
  %v569 = vand.u32 %v558, 2147483648
  %v570 = vsel %vm568, %v569, %v567
  %v571 = vmax.f32 %v570, 1e-12
  %v572 = vrcp.pop %v571
  %v573 = vmul.f32 %v571, %v572
  %v574 = vsub.f32 1.0, %v573
  %v575 = vmul.f32 %v572, %v574
  %v576 = vadd.f32 %v572, %v575
  %vm577 = vweird.f32 %v571
  %vm578 = vweird.f32 %v572
  %vm579 = vmor %vm577, %vm578
  %v580 = vsel %vm579, %v572, %v576
  %v581 = vand.u32 2147483647, %v571
  %vm582 = vcmp.eq.f32.partialorder %v581, 8.507059e+37
  %v583 = vand.u32 %v571, 2147483648
  %v584 = vor.u32 1.1754944e-38, %v583
  %v585 = vsel %vm582, %v584, %v580
  %v586 = vmul.f32 %v542, %v585
  %v587 = vmul.f32 %v543, %v585
  %v588 = vmul.f32 %v544, %v585
  %v589 = vmul.f32 %v545, %v585
  %v591 = vsel %vm45, %v316, 0
  %v594 = vsel %vm45, %v331, 0
  %v597 = vsel %vm45, %v346, 0
  %v600 = vsel %vm45, %v361, 0
  %v603 = vsel %vm45, %v376, 0
  %v606 = vsel %vm45, %v391, 0
  %v609 = vsel %vm45, %v406, 0
  %v612 = vsel %vm45, %v421, 0
  %v615 = vsel %vm45, %v436, 0
  %v618 = vsel %vm45, %v451, 0
  %v621 = vsel %vm45, %v466, 0
  %v624 = vsel %vm45, %v481, 0
  %v627 = vsel %vm45, %v496, 0
  %v630 = vsel %vm45, %v511, 0
  %v633 = vsel %vm45, %v526, 0
  %v636 = vsel %vm45, %v541, 0
  %638 = vmatpush.msra.mxu0 0.0
  %639 = vmatpush.msra.mxu0 0.0
  %640 = vmatpush.msra.mxu0 0.0
  %641 = vmatpush.msra.mxu0 0.0
  %642 = vmatpush.msra.mxu0 0.0
  %643 = vmatpush.msra.mxu0 0.0
  %644 = vmatpush.msra.mxu0 0.0
  %645 = vmatpush.msra.mxu0 0.0
  %646 = vmatpush.msra.mxu0 0.0
  %647 = vmatpush.msra.mxu0 0.0
  %648 = vmatpush.msra.mxu0 0.0
  %649 = vmatpush.msra.mxu0 0.0
  %650 = vmatpush.msra.mxu0 %v589
  %651 = vmatpush.msra.mxu0 %v588
  %652 = vmatpush.msra.mxu0 %v587
  %653 = vmatpush.msra.mxu0 %v586
  %654 = vmatmul.f32.gmra.mxu0 %v591
  %v655 = vpop.f32.mrf.mxu0
  %v656 = vadd.f32 0.0, %v655
  %657 = vmatmul.f32.gmra.mxu0 %v594
  %v658 = vpop.f32.mrf.mxu0
  %v659 = vadd.f32 0.0, %v658
  %660 = vmatmul.f32.gmra.mxu0 %v597
  %v661 = vpop.f32.mrf.mxu0
  %v662 = vadd.f32 0.0, %v661
  %663 = vmatmul.f32.gmra.mxu0 %v600
  %v664 = vpop.f32.mrf.mxu0
  %v665 = vadd.f32 0.0, %v664
  %666 = vmatmul.f32.gmra.mxu0 %v603
  %v667 = vpop.f32.mrf.mxu0
  %v668 = vadd.f32 0.0, %v667
  %669 = vmatmul.f32.gmra.mxu0 %v606
  %v670 = vpop.f32.mrf.mxu0
  %v671 = vadd.f32 0.0, %v670
  %672 = vmatmul.f32.gmra.mxu0 %v609
  %v673 = vpop.f32.mrf.mxu0
  %v674 = vadd.f32 0.0, %v673
  %675 = vmatmul.f32.gmra.mxu0 %v612
  %v676 = vpop.f32.mrf.mxu0
  %v677 = vadd.f32 0.0, %v676
  %678 = vmatmul.f32.gmra.mxu0 %v615
  %v679 = vpop.f32.mrf.mxu0
  %v680 = vadd.f32 0.0, %v679
  %681 = vmatmul.f32.gmra.mxu0 %v618
  %v682 = vpop.f32.mrf.mxu0
  %v683 = vadd.f32 0.0, %v682
  %684 = vmatmul.f32.gmra.mxu0 %v621
  %v685 = vpop.f32.mrf.mxu0
  %v686 = vadd.f32 0.0, %v685
  %687 = vmatmul.f32.gmra.mxu0 %v624
  %v688 = vpop.f32.mrf.mxu0
  %v689 = vadd.f32 0.0, %v688
  %690 = vmatmul.f32.gmra.mxu0 %v627
  %v691 = vpop.f32.mrf.mxu0
  %v692 = vadd.f32 0.0, %v691
  %693 = vmatmul.f32.gmra.mxu0 %v630
  %v694 = vpop.f32.mrf.mxu0
  %v695 = vadd.f32 0.0, %v694
  %696 = vmatmul.f32.gmra.mxu0 %v633
  %v697 = vpop.f32.mrf.mxu0
  %v698 = vadd.f32 0.0, %v697
  %699 = vmatmul.f32.gmra.mxu0 %v636
  %v700 = vpop.f32.mrf.mxu0
  %v701 = vadd.f32 0.0, %v700
  %702 = vdwg.mxu0
  %v703 = vmul.f32 %v656, 0.07
  %v704 = vmul.f32 %v659, 0.07
  %v705 = vmul.f32 %v662, 0.07
  %v706 = vmul.f32 %v665, 0.07
  %v707 = vmul.f32 %v668, 0.07
  %v708 = vmul.f32 %v671, 0.07
  %v709 = vmul.f32 %v674, 0.07
  %v710 = vmul.f32 %v677, 0.07
  %v711 = vmul.f32 %v680, 0.07
  %v712 = vmul.f32 %v683, 0.07
  %v713 = vmul.f32 %v686, 0.07
  %v714 = vmul.f32 %v689, 0.07
  %v715 = vmul.f32 %v692, 0.07
  %v716 = vmul.f32 %v695, 0.07
  %v717 = vmul.f32 %v698, 0.07
  %v718 = vmul.f32 %v701, 0.07
  %v719 = vsub.f32 %v703, 0.07
  %v720 = vsub.f32 %v704, 0.07
  %v721 = vsub.f32 %v705, 0.07
  %v722 = vsub.f32 %v706, 0.07
  %v723 = vsub.f32 %v707, 0.07
  %v724 = vsub.f32 %v708, 0.07
  %v725 = vsub.f32 %v709, 0.07
  %v726 = vsub.f32 %v710, 0.07
  %v727 = vsub.f32 %v711, 0.07
  %v728 = vsub.f32 %v712, 0.07
  %v729 = vsub.f32 %v713, 0.07
  %v730 = vsub.f32 %v714, 0.07
  %v731 = vsub.f32 %v715, 0.07
  %v732 = vsub.f32 %v716, 0.07
  %v733 = vsub.f32 %v717, 0.07
  %v734 = vsub.f32 %v718, 0.07
  %v735 = vmul.f32 %v719, 1.442695
  %v736 = vpow.pop %v735
  %v737 = vmul.f32 %v720, 1.442695
  %v738 = vpow.pop %v737
  %v739 = vmul.f32 %v721, 1.442695
  %v740 = vpow.pop %v739
  %v741 = vmul.f32 %v722, 1.442695
  %v742 = vpow.pop %v741
  %v743 = vmul.f32 %v723, 1.442695
  %v744 = vpow.pop %v743
  %v745 = vmul.f32 %v724, 1.442695
  %v746 = vpow.pop %v745
  %v747 = vmul.f32 %v725, 1.442695
  %v748 = vpow.pop %v747
  %v749 = vmul.f32 %v726, 1.442695
  %v750 = vpow.pop %v749
  %v751 = vmul.f32 %v727, 1.442695
  %v752 = vpow.pop %v751
  %v753 = vmul.f32 %v728, 1.442695
  %v754 = vpow.pop %v753
  %v755 = vmul.f32 %v729, 1.442695
  %v756 = vpow.pop %v755
  %v757 = vmul.f32 %v730, 1.442695
  %v758 = vpow.pop %v757
  %v759 = vmul.f32 %v731, 1.442695
  %v760 = vpow.pop %v759
  %v761 = vmul.f32 %v732, 1.442695
  %v762 = vpow.pop %v761
  %v763 = vmul.f32 %v733, 1.442695
  %v764 = vpow.pop %v763
  %v765 = vmul.f32 %v734, 1.442695
  %v766 = vpow.pop %v765
  %767 = vadd.xlane.f32.xlu0 %v736
  %v768 = vpop.xlane.xlu0 %767
  %769 = vadd.xlane.f32.xlu0 %v738
  %v770 = vpop.xlane.xlu0 %769
  %771 = vadd.xlane.f32.xlu0 %v740
  %v772 = vpop.xlane.xlu0 %771
  %773 = vadd.xlane.f32.xlu0 %v742
  %v774 = vpop.xlane.xlu0 %773
  %775 = vadd.xlane.f32.xlu0 %v744
  %v776 = vpop.xlane.xlu0 %775
  %777 = vadd.xlane.f32.xlu0 %v746
  %v778 = vpop.xlane.xlu0 %777
  %779 = vadd.xlane.f32.xlu0 %v748
  %v780 = vpop.xlane.xlu0 %779
  %781 = vadd.xlane.f32.xlu0 %v750
  %v782 = vpop.xlane.xlu0 %781
  %783 = vadd.xlane.f32.xlu0 %v752
  %v784 = vpop.xlane.xlu0 %783
  %785 = vadd.xlane.f32.xlu0 %v754
  %v786 = vpop.xlane.xlu0 %785
  %787 = vadd.xlane.f32.xlu0 %v756
  %v788 = vpop.xlane.xlu0 %787
  %789 = vadd.xlane.f32.xlu0 %v758
  %v790 = vpop.xlane.xlu0 %789
  %791 = vadd.xlane.f32.xlu0 %v760
  %v792 = vpop.xlane.xlu0 %791
  %793 = vadd.xlane.f32.xlu0 %v762
  %v794 = vpop.xlane.xlu0 %793
  %795 = vadd.xlane.f32.xlu0 %v764
  %v796 = vpop.xlane.xlu0 %795
  %797 = vadd.xlane.f32.xlu0 %v766
  %v798 = vpop.xlane.xlu0 %797
  %v799 = vlog2.pop %v768
  %v800 = vmul.f32 %v799, 0.6931472
  %v801 = vlog2.pop %v770
  %v802 = vmul.f32 %v801, 0.6931472
  %v803 = vlog2.pop %v772
  %v804 = vmul.f32 %v803, 0.6931472
  %v805 = vlog2.pop %v774
  %v806 = vmul.f32 %v805, 0.6931472
  %v807 = vlog2.pop %v776
  %v808 = vmul.f32 %v807, 0.6931472
  %v809 = vlog2.pop %v778
  %v810 = vmul.f32 %v809, 0.6931472
  %v811 = vlog2.pop %v780
  %v812 = vmul.f32 %v811, 0.6931472
  %v813 = vlog2.pop %v782
  %v814 = vmul.f32 %v813, 0.6931472
  %v815 = vlog2.pop %v784
  %v816 = vmul.f32 %v815, 0.6931472
  %v817 = vlog2.pop %v786
  %v818 = vmul.f32 %v817, 0.6931472
  %v819 = vlog2.pop %v788
  %v820 = vmul.f32 %v819, 0.6931472
  %v821 = vlog2.pop %v790
  %v822 = vmul.f32 %v821, 0.6931472
  %v823 = vlog2.pop %v792
  %v824 = vmul.f32 %v823, 0.6931472
  %v825 = vlog2.pop %v794
  %v826 = vmul.f32 %v825, 0.6931472
  %v827 = vlog2.pop %v796
  %v828 = vmul.f32 %v827, 0.6931472
  %v829 = vlog2.pop %v798
  %v830 = vmul.f32 %v829, 0.6931472
  %v831 = vadd.f32 %v800, 0.07
  %v832 = vadd.f32 %v802, 0.07
  %v833 = vadd.f32 %v804, 0.07
  %v834 = vadd.f32 %v806, 0.07
  %v835 = vadd.f32 %v808, 0.07
  %v836 = vadd.f32 %v810, 0.07
  %v837 = vadd.f32 %v812, 0.07
  %v838 = vadd.f32 %v814, 0.07
  %v839 = vadd.f32 %v816, 0.07
  %v840 = vadd.f32 %v818, 0.07
  %v841 = vadd.f32 %v820, 0.07
  %v842 = vadd.f32 %v822, 0.07
  %v843 = vadd.f32 %v824, 0.07
  %v844 = vadd.f32 %v826, 0.07
  %v845 = vadd.f32 %v828, 0.07
  %v846 = vadd.f32 %v830, 0.07
  %v847 = vlaneseq
  %v848 = vshrl.u32 %v847, 7
  %v849 = vadd.s32 %v848, 8
  %v850 = vadd.s32 %v848, 16
  %v851 = vadd.s32 %v848, 24
  %v852 = vadd.s32 %v848, 32
  %v853 = vadd.s32 %v848, 40
  %v854 = vadd.s32 %v848, 48
  %v855 = vadd.s32 %v848, 56
  %v856 = vadd.s32 %v848, 64
  %v857 = vadd.s32 %v848, 72
  %v858 = vadd.s32 %v848, 80
  %v859 = vadd.s32 %v848, 88
  %v860 = vadd.s32 %v848, 96
  %v861 = vadd.s32 %v848, 104
  %v862 = vadd.s32 %v848, 112
  %v863 = vadd.s32 %v848, 120
  %v864 = vlaneseq
  %v865 = vand.u32 %v864, 127
  %s866 = smul.u32 0, 128
  %v867 = vstv %s866
  %v868 = vadd.s32 %v848, %v867
  %v869 = vadd.s32 %v849, %v867
  %v870 = vadd.s32 %v850, %v867
  %v871 = vadd.s32 %v851, %v867
  %v872 = vadd.s32 %v852, %v867
  %v873 = vadd.s32 %v853, %v867
  %v874 = vadd.s32 %v854, %v867
  %v875 = vadd.s32 %v855, %v867
  %v876 = vadd.s32 %v856, %v867
  %v877 = vadd.s32 %v857, %v867
  %v878 = vadd.s32 %v858, %v867
  %v879 = vadd.s32 %v859, %v867
  %v880 = vadd.s32 %v860, %v867
  %v881 = vadd.s32 %v861, %v867
  %v882 = vadd.s32 %v862, %v867
  %v883 = vadd.s32 %v863, %v867
  %vm884 = vcmp.eq.s32.totalorder %v865, %v868
  %vm885 = vcmp.eq.s32.totalorder %v865, %v869
  %vm886 = vcmp.eq.s32.totalorder %v865, %v870
  %vm887 = vcmp.eq.s32.totalorder %v865, %v871
  %vm888 = vcmp.eq.s32.totalorder %v865, %v872
  %vm889 = vcmp.eq.s32.totalorder %v865, %v873
  %vm890 = vcmp.eq.s32.totalorder %v865, %v874
  %vm891 = vcmp.eq.s32.totalorder %v865, %v875
  %vm892 = vcmp.eq.s32.totalorder %v865, %v876
  %vm893 = vcmp.eq.s32.totalorder %v865, %v877
  %vm894 = vcmp.eq.s32.totalorder %v865, %v878
  %vm895 = vcmp.eq.s32.totalorder %v865, %v879
  %vm896 = vcmp.eq.s32.totalorder %v865, %v880
  %vm897 = vcmp.eq.s32.totalorder %v865, %v881
  %vm898 = vcmp.eq.s32.totalorder %v865, %v882
  %vm899 = vcmp.eq.s32.totalorder %v865, %v883
  %v900 = vsel %vm884, %v703, 0.0
  %v901 = vsel %vm885, %v704, 0.0
  %v902 = vsel %vm886, %v705, 0.0
  %v903 = vsel %vm887, %v706, 0.0
  %v904 = vsel %vm888, %v707, 0.0
  %v905 = vsel %vm889, %v708, 0.0
  %v906 = vsel %vm890, %v709, 0.0
  %v907 = vsel %vm891, %v710, 0.0
  %v908 = vsel %vm892, %v711, 0.0
  %v909 = vsel %vm893, %v712, 0.0
  %v910 = vsel %vm894, %v713, 0.0
  %v911 = vsel %vm895, %v714, 0.0
  %v912 = vsel %vm896, %v715, 0.0
  %v913 = vsel %vm897, %v716, 0.0
  %v914 = vsel %vm898, %v717, 0.0
  %v915 = vsel %vm899, %v718, 0.0
  %v916 = vadd.f32 %v900, %v901
  %v917 = vadd.f32 %v916, %v902
  %v918 = vadd.f32 %v917, %v903
  %v919 = vadd.f32 %v918, %v904
  %v920 = vadd.f32 %v919, %v905
  %v921 = vadd.f32 %v920, %v906
  %v922 = vadd.f32 %v921, %v907
  %v923 = vadd.f32 %v922, %v908
  %v924 = vadd.f32 %v923, %v909
  %v925 = vadd.f32 %v924, %v910
  %v926 = vadd.f32 %v925, %v911
  %v927 = vadd.f32 %v926, %v912
  %v928 = vadd.f32 %v927, %v913
  %v929 = vadd.f32 %v928, %v914
  %v930 = vadd.f32 %v929, %v915
  %931 = vadd.xlane.f32.xlu0 %v930
  %v932 = vpop.xlane.xlu0 %931
  %v933 = vrot.slane %v932, 4
  %v934 = vadd.f32 %v932, %v933
  %v935 = vrot.slane %v934, 2
  %v936 = vadd.f32 %v934, %v935
  %v937 = vrot.slane %v936, 1
  %v938 = vadd.f32 %v936, %v937
  %s939 = vtos %v938
  %vm940 = vcmask 7168
  %v941 = vsel %vm940, %v831, 0.0
  %v942 = vsel %vm940, %v832, 0.0
  %v943 = vadd.f32 %v941, %v942
  %v944 = vsel %vm940, %v833, 0.0
  %v945 = vadd.f32 %v943, %v944
  %v946 = vsel %vm940, %v834, 0.0
  %v947 = vadd.f32 %v945, %v946
  %v948 = vsel %vm940, %v835, 0.0
  %v949 = vadd.f32 %v947, %v948
  %v950 = vsel %vm940, %v836, 0.0
  %v951 = vadd.f32 %v949, %v950
  %v952 = vsel %vm940, %v837, 0.0
  %v953 = vadd.f32 %v951, %v952
  %v954 = vsel %vm940, %v838, 0.0
  %v955 = vadd.f32 %v953, %v954
  %v956 = vsel %vm940, %v839, 0.0
  %v957 = vadd.f32 %v955, %v956
  %v958 = vsel %vm940, %v840, 0.0
  %v959 = vadd.f32 %v957, %v958
  %v960 = vsel %vm940, %v841, 0.0
  %v961 = vadd.f32 %v959, %v960
  %v962 = vsel %vm940, %v842, 0.0
  %v963 = vadd.f32 %v961, %v962
  %v964 = vsel %vm940, %v843, 0.0
  %v965 = vadd.f32 %v963, %v964
  %v966 = vsel %vm940, %v844, 0.0
  %v967 = vadd.f32 %v965, %v966
  %v968 = vsel %vm940, %v845, 0.0
  %v969 = vadd.f32 %v967, %v968
  %v970 = vsel %vm940, %v846, 0.0
  %v971 = vadd.f32 %v969, %v970
  %972 = vadd.xlane.f32.xlu0 %v971
  %v973 = vpop.xlane.xlu0 %972
  %v974 = vrot.slane %v973, 4
  %v975 = vadd.f32 %v973, %v974
  %v976 = vrot.slane %v975, 2
  %v977 = vadd.f32 %v975, %v976
  %v978 = vrot.slane %v977, 1
  %v979 = vadd.f32 %v977, %v978
  %s980 = vtos %v979
  %s981 = smul.f32 %s939, 2.0
  %s982 = ssub.f32 %s980, %s981
  %v983 = vstv %s982
  %984 = vst [vmem:[%s2] sm:$0x1] %v983
  %v985 = vadd.f32 %v736, %v738
  %v986 = vadd.f32 %v985, %v740
  %v987 = vadd.f32 %v986, %v742
  %v988 = vadd.f32 %v987, %v744
  %v989 = vadd.f32 %v988, %v746
  %v990 = vadd.f32 %v989, %v748
  %v991 = vadd.f32 %v990, %v750
  %v992 = vadd.f32 %v991, %v752
  %v993 = vadd.f32 %v992, %v754
  %v994 = vadd.f32 %v993, %v756
  %v995 = vadd.f32 %v994, %v758
  %v996 = vadd.f32 %v995, %v760
  %v997 = vadd.f32 %v996, %v762
  %v998 = vadd.f32 %v997, %v764
  %v999 = vadd.f32 %v998, %v766
  %v1000 = vrot.slane %v999, 4
  %v1001 = vadd.f32 %v999, %v1000
  %v1002 = vrot.slane %v1001, 2
  %v1003 = vadd.f32 %v1001, %v1002
  %v1004 = vrot.slane %v1003, 1
  %v1005 = vadd.f32 %v1003, %v1004
  %1006 = vst [vmem:[%s3] sm:$0x1] %v1005
  // Predicated region
  $region10: #{mask_vision_contrastive_loss.1} parent=0 // pred_check
    _
  $region11: #{mask_vision_contrastive_loss.1} parent=0 // pred_check_branch
    %1008 = sbr.rel (0) target = $region13
  $region12: #{mask_vision_contrastive_loss.1} parent=0 // pred_region
    _
  $region13: #{mask_vision_contrastive_loss.1} parent=0 // pred_fallthru
    _
  // Predicated region
  $region14: #{mask_vision_contrastive_loss.1} parent=0 // pred_check
    _
  $region15: #{mask_vision_contrastive_loss.1} parent=0 // pred_check_branch
    %1010 = sbr.rel (0) target = $region17
  $region16: #{mask_vision_contrastive_loss.1} parent=0 // pred_region
    _
  $region17: #{mask_vision_contrastive_loss.1} parent=0 // pred_fallthru
    _
  // Predicated region
  $region18: #{mask_vision_contrastive_loss.1} parent=0 // pred_check
    _
  $region19: #{mask_vision_contrastive_loss.1} parent=0 // pred_check_branch
    %1012 = sbr.rel (0) target = $region21
  $region20: #{mask_vision_contrastive_loss.1} parent=0 // pred_region
    _
  $region21: #{mask_vision_contrastive_loss.1} parent=0 // pred_fallthru
    _
  // Predicated region
  $region22: #{mask_vision_contrastive_loss.1} parent=0 // pred_check
    _
  $region23: #{mask_vision_contrastive_loss.1} parent=0 // pred_check_branch
    %1014 = sbr.rel (0) target = $region25
  $region24: #{mask_vision_contrastive_loss.1} parent=0 // pred_region
    _
  $region25: #{mask_vision_contrastive_loss.1} parent=0 // pred_fallthru
    _

</llo_original>
